<compile_context>
chip_gen: v5e
topology: v5e:2x2
jax: 0.10.0
libtpu: 0.0.40
codegen_flags: <defaults>
</compile_context>

<pallas_src>
import math
import jax
import jax.numpy as jnp
from jax.experimental import pallas as pl
from jax.experimental.pallas import tpu as pltpu


# ----------------------------- in-kernel math helpers ----------------------------

def _erf(x):
    # Abramowitz & Stegun 7.1.26 rational approximation (max abs err ~1.5e-7),
    # built only from Mosaic-supported elementwise ops (exp / mul / add / where).
    a1, a2, a3, a4, a5 = (0.254829592, -0.284496736, 1.421413741,
                          -1.453152027, 1.061405429)
    p = 0.3275911
    z = jnp.abs(x)
    t = 1.0 / (1.0 + p * z)
    poly = ((((a5 * t + a4) * t + a3) * t + a2) * t + a1) * t
    y = 1.0 - poly * jnp.exp(-z * z)
    return jnp.where(x >= 0, y, -y)


def _gelu(x):
    # Matches torch.nn.GELU() (exact erf variant) to ~1e-7.
    return 0.5 * x * (1.0 + _erf(x * (1.0 / math.sqrt(2.0))))


# --------------------------------- Pallas kernel ----------------------------------

def _ff_kernel(x_ref, w1_ref, b1_ref, w2_ref, b2_ref, o_ref, acc_ref):
    # Grid: (M blocks [parallel], hidden blocks [arbitrary / reduction]).
    j = pl.program_id(1)

    @pl.when(j == 0)
    def _init():
        acc_ref[...] = jnp.zeros_like(acc_ref)

    # (tm, dim) @ (dim, th) -> (tm, th), f32 accumulation on the MXU.
    h = jnp.dot(x_ref[...], w1_ref[...], preferred_element_type=jnp.float32)
    h = _gelu(h + b1_ref[...])
    # (tm, th) @ (th, dim_out) accumulated over the hidden axis.
    acc_ref[...] += jnp.dot(h, w2_ref[...], preferred_element_type=jnp.float32)

    @pl.when(j == pl.num_programs(1) - 1)
    def _finalize():
        o_ref[...] = (acc_ref[...] + b2_ref[...]).astype(o_ref.dtype)


def feedforward(x, w1, b1, w2, b2, *, block_m=128, block_h=512):
    """x: (M, dim); w1: (dim, inner); b1: (1, inner); w2: (inner, dim_out); b2: (1, dim_out)."""
    m, dim = x.shape
    inner = w1.shape[1]
    dim_out = w2.shape[1]

    # Row tile: pad M to a sublane multiple so the M axis can be a parallel grid axis.
    tm = min(block_m, max(8, ((m + 7) // 8) * 8))
    mp = ((m + tm - 1) // tm) * tm
    x_p = jnp.pad(x, ((0, mp - m), (0, 0))) if mp != m else x

    # Hidden tile: tile the 4*dim axis when it is large (keeps w1/w2 tiles in VMEM).
    th = block_h if (inner >= block_h and inner % block_h == 0) else inner

    grid = (mp // tm, inner // th)

    out = pl.pallas_call(
        _ff_kernel,
        out_shape=jax.ShapeDtypeStruct((mp, dim_out), x.dtype),
        grid=grid,
        in_specs=[
            pl.BlockSpec((tm, dim), lambda i, j: (i, 0)),        # x rows
            pl.BlockSpec((dim, th), lambda i, j: (0, j)),        # w1 hidden slab
            pl.BlockSpec((1, th), lambda i, j: (0, j)),          # b1 hidden slab
            pl.BlockSpec((th, dim_out), lambda i, j: (j, 0)),    # w2 hidden slab
            pl.BlockSpec((1, dim_out), lambda i, j: (0, 0)),     # b2
        ],
        out_specs=pl.BlockSpec((tm, dim_out), lambda i, j: (i, 0)),
        scratch_shapes=[pltpu.VMEM((tm, dim_out), jnp.float32)],
        compiler_params=pltpu.CompilerParams(
            dimension_semantics=("parallel", "arbitrary")),
    )(x_p, w1, b1, w2, b2)

    return out[:m] if mp != m else out


# -------------------------------------- main ---------------------------------------

if __name__ == "__main__":
    dim = 32          # FeedForward(dim=32) as in the decode test
    mult = 4
    inner = dim * mult
    batch = 2         # single-token decode step per batch element -> x is (batch, dim)

    key = jax.random.PRNGKey(0)
    kx, k1, k2, k3, k4 = jax.random.split(key, 5)

    x = jax.random.normal(kx, (batch, dim), jnp.float32)
    # nn.Linear-style init: U(-1/sqrt(fan_in), 1/sqrt(fan_in))
    w1 = jax.random.uniform(k1, (dim, inner), jnp.float32, -1.0, 1.0) / math.sqrt(dim)
    b1 = jax.random.uniform(k2, (1, inner), jnp.float32, -1.0, 1.0) / math.sqrt(dim)
    w2 = jax.random.uniform(k3, (inner, dim), jnp.float32, -1.0, 1.0) / math.sqrt(inner)
    b2 = jax.random.uniform(k4, (1, dim), jnp.float32, -1.0, 1.0) / math.sqrt(inner)

    out = feedforward(x, w1, b1, w2, b2)
    out = jax.block_until_ready(out)

    # Pure-JAX reference (exact-erf GELU, i.e. torch.nn.GELU() default).
    ref = jax.nn.gelu(x @ w1 + b1, approximate=False) @ w2 + b2

    assert out.shape == (batch, dim) and out.dtype == jnp.float32
    max_err = float(jnp.max(jnp.abs(out - ref)))
    assert max_err < 1e-4, f"mismatch vs reference: {max_err}"
    print("KERNEL_OK")
</pallas_src>

<mosaic_0001>
module attributes {stable_mosaic.version = 11 : i64} {
  func.func @_ff_kernel(%arg0: i32, %arg1: i32, %arg2: memref<8x32xf32, #tpu.memory_space<vmem>>, %arg3: memref<32x128xf32, #tpu.memory_space<vmem>>, %arg4: memref<1x128xf32, #tpu.memory_space<vmem>>, %arg5: memref<128x32xf32, #tpu.memory_space<vmem>>, %arg6: memref<1x32xf32, #tpu.memory_space<vmem>>, %arg7: memref<8x32xf32, #tpu.memory_space<vmem>>, %arg8: memref<8x32xf32, #tpu.memory_space<vmem>>) attributes {dimension_semantics = [#tpu.dimension_semantics<parallel>, #tpu.dimension_semantics<arbitrary>], iteration_bounds = array<i64: 1, 1>, scalar_prefetch = 0 : i64, scratch_operands = 1 : i64, tpu.core_type = #tpu.core_type<tc>, window_params = [{transform_indices = @transform_0, window_bounds = array<i64: 8, 32>}, {transform_indices = @transform_1, window_bounds = array<i64: 32, 128>}, {transform_indices = @transform_2, window_bounds = array<i64: 1, 128>}, {transform_indices = @transform_3, window_bounds = array<i64: 128, 32>}, {pipeline_mode = #tpu.pipeline_mode<synchronous>, transform_indices = @transform_4, window_bounds = array<i64: 1, 32>}, {transform_indices = @transform_5, window_bounds = array<i64: 8, 32>}]} {
    %c0_i32 = arith.constant 0 : i32
    %0 = arith.cmpi eq, %arg1, %c0_i32 : i32
    %1 = arith.extui %0 : i1 to i32
    %c0_i32_0 = arith.constant 0 : i32
    %2 = arith.cmpi ne, %1, %c0_i32_0 : i32
    scf.if %2 {
      %cst_30 = arith.constant 0.000000e+00 : f32
      %57 = vector.broadcast %cst_30 : f32 to vector<8x32xf32>
      %c0_31 = arith.constant 0 : index
      %c0_32 = arith.constant 0 : index
      %58 = vector.load %arg8[%c0_31, %c0_32] : memref<8x32xf32, #tpu.memory_space<vmem>>, vector<8x32xf32>
      tpu.vector_store %arg8[%c0_31, %c0_32], %57 {strides = array<i32>} : memref<8x32xf32, #tpu.memory_space<vmem>>, vector<8x32xf32>,
    } else {
    }
    %c0 = arith.constant 0 : index
    %c0_1 = arith.constant 0 : index
    %3 = vector.load %arg2[%c0, %c0_1] : memref<8x32xf32, #tpu.memory_space<vmem>>, vector<8x32xf32>
    %c0_2 = arith.constant 0 : index
    %c0_3 = arith.constant 0 : index
    %4 = vector.load %arg3[%c0_2, %c0_3] : memref<32x128xf32, #tpu.memory_space<vmem>>, vector<32x128xf32>
    %cst = arith.constant dense<0.000000e+00> : vector<8x128xf32>
    %5 = tpu.matmul %3, %4, %cst {dimension_numbers = #tpu.dot_dimension_numbers<[1], [0], [0], [1], [0, 0, 1, 1], [], []>} : vector<8x32xf32>, vector<32x128xf32>, vector<8x128xf32> -> vector<8x128xf32>
    %c0_4 = arith.constant 0 : index
    %c0_5 = arith.constant 0 : index
    %6 = vector.load %arg4[%c0_4, %c0_5] : memref<1x128xf32, #tpu.memory_space<vmem>>, vector<1x128xf32>
    %7 = vector.broadcast %6 : vector<1x128xf32> to vector<8x128xf32>
    %8 = arith.addf %5, %7 : vector<8x128xf32>
    %cst_6 = arith.constant 5.000000e-01 : f32
    %9 = vector.broadcast %cst_6 : f32 to vector<8x128xf32>
    %10 = arith.mulf %9, %8 : vector<8x128xf32>
    %cst_7 = arith.constant 0.707106769 : f32
    %11 = vector.broadcast %cst_7 : f32 to vector<8x128xf32>
    %12 = arith.mulf %8, %11 : vector<8x128xf32>
    %13 = math.absf %12 : vector<8x128xf32>
    %cst_8 = arith.constant 0.327591091 : f32
    %14 = vector.broadcast %cst_8 : f32 to vector<8x128xf32>
    %15 = arith.mulf %14, %13 : vector<8x128xf32>
    %cst_9 = arith.constant 1.000000e+00 : f32
    %16 = vector.broadcast %cst_9 : f32 to vector<8x128xf32>
    %17 = arith.addf %16, %15 : vector<8x128xf32>
    %cst_10 = arith.constant 1.000000e+00 : f32
    %18 = vector.broadcast %cst_10 : f32 to vector<8x128xf32>
    %19 = arith.divf %18, %17 : vector<8x128xf32>
    %cst_11 = arith.constant 1.06140542 : f32
    %20 = vector.broadcast %cst_11 : f32 to vector<8x128xf32>
    %21 = arith.mulf %20, %19 : vector<8x128xf32>
    %cst_12 = arith.constant -1.45315206 : f32
    %22 = vector.broadcast %cst_12 : f32 to vector<8x128xf32>
    %23 = arith.addf %21, %22 : vector<8x128xf32>
    %24 = arith.mulf %23, %19 : vector<8x128xf32>
    %cst_13 = arith.constant 1.42141378 : f32
    %25 = vector.broadcast %cst_13 : f32 to vector<8x128xf32>
    %26 = arith.addf %24, %25 : vector<8x128xf32>
    %27 = arith.mulf %26, %19 : vector<8x128xf32>
    %cst_14 = arith.constant -0.284496725 : f32
    %28 = vector.broadcast %cst_14 : f32 to vector<8x128xf32>
    %29 = arith.addf %27, %28 : vector<8x128xf32>
    %30 = arith.mulf %29, %19 : vector<8x128xf32>
    %cst_15 = arith.constant 0.254829586 : f32
    %31 = vector.broadcast %cst_15 : f32 to vector<8x128xf32>
    %32 = arith.addf %30, %31 : vector<8x128xf32>
    %33 = arith.mulf %32, %19 : vector<8x128xf32>
    %cst_16 = arith.constant 0.000000e+00 : f32
    %34 = vector.broadcast %cst_16 : f32 to vector<8x128xf32>
    %35 = arith.subf %34, %13 : vector<8x128xf32>
    %36 = arith.mulf %35, %13 : vector<8x128xf32>
    %37 = math.exp %36 : vector<8x128xf32>
    %38 = arith.mulf %33, %37 : vector<8x128xf32>
    %cst_17 = arith.constant 1.000000e+00 : f32
    %39 = vector.broadcast %cst_17 : f32 to vector<8x128xf32>
    %40 = arith.subf %39, %38 : vector<8x128xf32>
    %cst_18 = arith.constant 0.000000e+00 : f32
    %41 = vector.broadcast %cst_18 : f32 to vector<8x128xf32>
    %42 = arith.cmpf oge, %12, %41 : vector<8x128xf32>
    %cst_19 = arith.constant 0.000000e+00 : f32
    %43 = vector.broadcast %cst_19 : f32 to vector<8x128xf32>
    %44 = arith.subf %43, %40 : vector<8x128xf32>
    %45 = arith.select %42, %40, %44 : vector<8x128xi1>, vector<8x128xf32>
    %cst_20 = arith.constant 1.000000e+00 : f32
    %46 = vector.broadcast %cst_20 : f32 to vector<8x128xf32>
    %47 = arith.addf %46, %45 : vector<8x128xf32>
    %48 = arith.mulf %10, %47 : vector<8x128xf32>
    %c0_21 = arith.constant 0 : index
    %c0_22 = arith.constant 0 : index
    %49 = vector.load %arg8[%c0_21, %c0_22] : memref<8x32xf32, #tpu.memory_space<vmem>>, vector<8x32xf32>
    %c0_23 = arith.constant 0 : index
    %c0_24 = arith.constant 0 : index
    %50 = vector.load %arg5[%c0_23, %c0_24] : memref<128x32xf32, #tpu.memory_space<vmem>>, vector<128x32xf32>
    %cst_25 = arith.constant dense<0.000000e+00> : vector<8x32xf32>
    %51 = tpu.matmul %48, %50, %cst_25 {dimension_numbers = #tpu.dot_dimension_numbers<[1], [0], [0], [1], [0, 0, 1, 1], [], []>} : vector<8x128xf32>, vector<128x32xf32>, vector<8x32xf32> -> vector<8x32xf32>
    %52 = arith.addf %49, %51 : vector<8x32xf32>
    %c0_26 = arith.constant 0 : index
    %c0_27 = arith.constant 0 : index
    %53 = vector.load %arg8[%c0_26, %c0_27] : memref<8x32xf32, #tpu.memory_space<vmem>>, vector<8x32xf32>
    tpu.vector_store %arg8[%c0_26, %c0_27], %52 {strides = array<i32>} : memref<8x32xf32, #tpu.memory_space<vmem>>, vector<8x32xf32>,
    %c0_i32_28 = arith.constant 0 : i32
    %54 = arith.cmpi eq, %arg1, %c0_i32_28 : i32
    %55 = arith.extui %54 : i1 to i32
    %c0_i32_29 = arith.constant 0 : i32
    %56 = arith.cmpi ne, %55, %c0_i32_29 : i32
    scf.if %56 {
      %c0_30 = arith.constant 0 : index
      %c0_31 = arith.constant 0 : index
      %57 = vector.load %arg8[%c0_30, %c0_31] : memref<8x32xf32, #tpu.memory_space<vmem>>, vector<8x32xf32>
      %c0_32 = arith.constant 0 : index
      %c0_33 = arith.constant 0 : index
      %58 = vector.load %arg6[%c0_32, %c0_33] : memref<1x32xf32, #tpu.memory_space<vmem>>, vector<1x32xf32>
      %59 = vector.broadcast %58 : vector<1x32xf32> to vector<8x32xf32>
      %60 = arith.addf %57, %59 : vector<8x32xf32>
      %c0_34 = arith.constant 0 : index
      %c0_35 = arith.constant 0 : index
      %61 = vector.load %arg7[%c0_34, %c0_35] : memref<8x32xf32, #tpu.memory_space<vmem>>, vector<8x32xf32>
      tpu.vector_store %arg7[%c0_34, %c0_35], %60 {strides = array<i32>} : memref<8x32xf32, #tpu.memory_space<vmem>>, vector<8x32xf32>,
    } else {
    }
    return
  }
  func.func @transform_0(%arg0: i32, %arg1: i32) -> (i32, i32) {
    %c0_i32 = arith.constant 0 : i32
    %c0_i32_0 = arith.constant 0 : i32
    return %arg0, %c0_i32 : i32, i32
  }
  func.func @transform_1(%arg0: i32, %arg1: i32) -> (i32, i32) {
    %c0_i32 = arith.constant 0 : i32
    %c0_i32_0 = arith.constant 0 : i32
    return %c0_i32, %arg1 : i32, i32
  }
  func.func @transform_2(%arg0: i32, %arg1: i32) -> (i32, i32) {
    %c0_i32 = arith.constant 0 : i32
    %c0_i32_0 = arith.constant 0 : i32
    return %c0_i32, %arg1 : i32, i32
  }
  func.func @transform_3(%arg0: i32, %arg1: i32) -> (i32, i32) {
    %c0_i32 = arith.constant 0 : i32
    %c0_i32_0 = arith.constant 0 : i32
    return %arg1, %c0_i32 : i32, i32
  }
  func.func @transform_4(%arg0: i32, %arg1: i32) -> (i32, i32) {
    %c0_i32 = arith.constant 0 : i32
    %c0_i32_0 = arith.constant 0 : i32
    %c0_i32_1 = arith.constant 0 : i32
    return %c0_i32, %c0_i32_0 : i32, i32
  }
  func.func @transform_5(%arg0: i32, %arg1: i32) -> (i32, i32) {
    %c0_i32 = arith.constant 0 : i32
    %c0_i32_0 = arith.constant 0 : i32
    return %arg0, %c0_i32 : i32, i32
  }
}

</mosaic_0001>

<llo_original>
// kernel: tpu_custom_call.1
$region0: #{tpu_custom_call.1}
  #allocation0 [shape = 'u32[]', space=smem, size = 0x4, offset = 0x4, fixed_abs, tag = 'smem constant byte address 0x4 - core index']
  #allocation1 [shape = 'u32[72,128]{1,0:T(1,128)}', space=vmem, size = 0x9000, scoped, tag = 'internal scratch']
  #allocation2 [shape = 'f32[8,32]{1,0:T(8,128)}', space=vmem, size = 0x1000, scoped, tag = 'scratch operand']
  %s0 = inlined_call_operand.vmem [shape: f32[8,32], index: 0, kind: input, shape index: {}]
  %s1 = inlined_call_operand.vmem [shape: f32[32,128], index: 1, kind: input, shape index: {}]
  %s2 = inlined_call_operand.vmem [shape: f32[1,128], index: 2, kind: input, shape index: {}]
  %s3 = inlined_call_operand.vmem [shape: f32[128,32], index: 3, kind: input, shape index: {}]
  %s4 = inlined_call_operand.vmem [shape: f32[1,32], index: 4, kind: input, shape index: {}]
  %s5 = inlined_call_operand.hbm [shape: f32[8,32], index: 5, kind: output, shape index: {}]
  %s6 = sld [smem:[#allocation0]]
  $region38: #{tpu_custom_call.1} parent=0
    _
  %s8 = ssub.s32 1, %s6
  %s9 = scalar_select 0, %s8, %s6
  $region1: #{tpu_custom_call.1} parent=0
    #allocation3 [shape = 'u8[4096]{0}', space=vmem, size = 0x1000, scoped, tag = 'output window, operand 0, single buffered']
    #allocation4 [shape = 's32[1]{0}', space=sflag, size = 0x4, scoped, tag = 'scoped memory for tpu_custom_call.1']
    %10 = vsyncpa [#allocation4], 0
    // Predicated region
    $region2: #{tpu_custom_call.1} parent=1 // pred_check
      _
    $region3: #{tpu_custom_call.1} parent=1 // pred_check_branch
      %12 = sbr.rel (0) target = $region5
    $region4: #{tpu_custom_call.1} parent=1 // pred_region
      _
    $region5: #{tpu_custom_call.1} parent=1 // pred_fallthru
      _
    // Predicated region
    $region6: #{tpu_custom_call.1} parent=1 // pred_check
      _
    $region7: #{tpu_custom_call.1} parent=1 // pred_check_branch
      %14 = sbr.rel (0) target = $region9
    $region8: #{tpu_custom_call.1} parent=1 // pred_region
      _
    $region9: #{tpu_custom_call.1} parent=1 // pred_fallthru
      _
    // Predicated region
    $region10: #{tpu_custom_call.1} parent=1 // pred_check
      _
    $region11: #{tpu_custom_call.1} parent=1 // pred_check_branch
      %16 = sbr.rel (0) target = $region13
    $region12: #{tpu_custom_call.1} parent=1 // pred_region
      _
    $region13: #{tpu_custom_call.1} parent=1 // pred_fallthru
      _
    // Predicated region
    $region14: #{tpu_custom_call.1} parent=1 // pred_check
      _
    $region15: #{tpu_custom_call.1} parent=1 // pred_check_branch
      %18 = sbr.rel (0) target = $region17
    $region16: #{tpu_custom_call.1} parent=1 // pred_region
      _
    $region17: #{tpu_custom_call.1} parent=1 // pred_fallthru
      _
    // Predicated region
    $region18: #{tpu_custom_call.1} parent=1 // pred_check
      _
    $region19: #{tpu_custom_call.1} parent=1 // pred_check_branch
      %20 = sbr.rel (0) target = $region21
    $region20: #{tpu_custom_call.1} parent=1 // pred_region
      _
    $region21: #{tpu_custom_call.1} parent=1 // pred_fallthru
      _
    %p21 = scmp.eq.s32.totalorder 0, 0
    // Predicated region
    $region22: #{tpu_custom_call.1} parent=1 // pred_check
      %p22 = pneg %p21
    $region23: #{tpu_custom_call.1} parent=1 // pred_check_branch
      %24 = sbr.rel (%p22) target = $region25
    $region24: #{tpu_custom_call.1} parent=1 // pred_region
      %vm25 = vcmask 261120
      %26 = vst.msk [vmem:[#allocation2] sm:$0xff] %vm25, 0.0
    $region25: #{tpu_custom_call.1} parent=1 // pred_fallthru
      _
    %v27 = vld [vmem:[%s0] sm:$0xff]
    %v28 = vld [vmem:[%s1] sm:$0xff]
    %v29 = vld [vmem:[%s1 + $0x8] sm:$0xff]
    %v30 = vld [vmem:[%s1 + $0x10] sm:$0xff]
    %v31 = vld [vmem:[%s1 + $0x18] sm:$0xff]
    %v32 = vld [vmem:[%s2] sm:$0x1]
    %v34 = vperm.slane %v32, 0
    %vm36 = vcmask 261120
    %v38 = vsel %vm36, %v27, 0
    %40 = vmatpush.msra.mxu0 0.0
    %41 = vmatpush.msra.mxu0 0.0
    %42 = vmatpush.msra.mxu0 0.0
    %43 = vmatpush.msra.mxu0 0.0
    %44 = vmatpush.msra.mxu0 0.0
    %45 = vmatpush.msra.mxu0 0.0
    %46 = vmatpush.msra.mxu0 0.0
    %47 = vmatpush.msra.mxu0 0.0
    %48 = vmatpush.msra.mxu0 0.0
    %49 = vmatpush.msra.mxu0 0.0
    %50 = vmatpush.msra.mxu0 0.0
    %51 = vmatpush.msra.mxu0 0.0
    %52 = vmatpush.msra.mxu0 %v31
    %53 = vmatpush.msra.mxu0 %v30
    %54 = vmatpush.msra.mxu0 %v29
    %55 = vmatpush.msra.mxu0 %v28
    %56 = vmatmul.f32.gmra.mxu0 %v38
    %v57 = vpop.f32.mrf.mxu0
    %v58 = vadd.f32 %v34, %v57
    %59 = vdwg.mxu0
    %v60 = vmul.f32 %v58, 0.5
    %v61 = vmul.f32 %v58, 0.70710677
    %v62 = vand.u32 2147483647, %v61
    %v63 = vmul.f32 %v62, 0.3275911
    %v64 = vadd.f32 %v63, 1.0
    %v65 = vrcp.pop %v64
    %v66 = vmul.f32 %v64, %v65
    %v67 = vsub.f32 1.0, %v66
    %v68 = vmul.f32 %v65, %v67
    %v69 = vadd.f32 %v65, %v68
    %vm70 = vweird.f32 %v64
    %vm71 = vweird.f32 %v65
    %vm72 = vmor %vm70, %vm71
    %v73 = vsel %vm72, %v65, %v69
    %v74 = vand.u32 2147483647, %v64
    %vm75 = vcmp.eq.f32.partialorder %v74, 8.507059e+37
    %v76 = vand.u32 %v64, 2147483648
    %v77 = vor.u32 1.1754944e-38, %v76
    %v78 = vsel %vm75, %v77, %v73
    %v79 = vmul.f32 1.0, %v78
    %v80 = vmul.f32 %v79, 1.0614054
    %v81 = vadd.f32 %v80, -1.4531521
    %v82 = vmul.f32 %v81, %v79
    %v83 = vadd.f32 %v82, 1.4214138
    %v84 = vmul.f32 %v83, %v79
    %v85 = vadd.f32 %v84, -0.28449672
    %v86 = vmul.f32 %v85, %v79
    %v87 = vadd.f32 %v86, 0.2548296
    %v88 = vmul.f32 %v87, %v79
    %v89 = vsub.f32 0.0, %v62
    %v90 = vmul.f32 %v89, %v62
    %v91 = vmul.f32 %v90, 1.442695
    %v92 = vpow.pop %v91
    %v93 = vmul.f32 %v88, %v92
    %v94 = vsub.f32 1.0, %v93
    %vm95 = vcmp.ge.f32.partialorder %v61, 0.0
    %v96 = vsub.f32 0.0, %v94
    %v97 = vsel %vm95, %v94, %v96
    %v98 = vadd.f32 %v97, 1.0
    %v99 = vmul.f32 %v60, %v98
    %v100 = vld [vmem:[#allocation2] sm:$0xff]
    %v101 = vld [vmem:[%s3] sm:$0xff]
    %v102 = vld [vmem:[%s3 + $0x8] sm:$0xff]
    %v103 = vld [vmem:[%s3 + $0x10] sm:$0xff]
    %v104 = vld [vmem:[%s3 + $0x18] sm:$0xff]
    %v105 = vld [vmem:[%s3 + $0x20] sm:$0xff]
    %v106 = vld [vmem:[%s3 + $0x28] sm:$0xff]
    %v107 = vld [vmem:[%s3 + $0x30] sm:$0xff]
    %v108 = vld [vmem:[%s3 + $0x38] sm:$0xff]
    %v109 = vld [vmem:[%s3 + $0x40] sm:$0xff]
    %v110 = vld [vmem:[%s3 + $0x48] sm:$0xff]
    %v111 = vld [vmem:[%s3 + $0x50] sm:$0xff]
    %v112 = vld [vmem:[%s3 + $0x58] sm:$0xff]
    %v113 = vld [vmem:[%s3 + $0x60] sm:$0xff]
    %v114 = vld [vmem:[%s3 + $0x68] sm:$0xff]
    %v115 = vld [vmem:[%s3 + $0x70] sm:$0xff]
    %v116 = vld [vmem:[%s3 + $0x78] sm:$0xff]
    %117 = vmatpush.msra.mxu0 %v116
    %118 = vmatpush.msra.mxu0 %v115
    %119 = vmatpush.msra.mxu0 %v114
    %120 = vmatpush.msra.mxu0 %v113
    %121 = vmatpush.msra.mxu0 %v112
    %122 = vmatpush.msra.mxu0 %v111
    %123 = vmatpush.msra.mxu0 %v110
    %124 = vmatpush.msra.mxu0 %v109
    %125 = vmatpush.msra.mxu0 %v108
    %126 = vmatpush.msra.mxu0 %v107
    %127 = vmatpush.msra.mxu0 %v106
    %128 = vmatpush.msra.mxu0 %v105
    %129 = vmatpush.msra.mxu0 %v104
    %130 = vmatpush.msra.mxu0 %v103
    %131 = vmatpush.msra.mxu0 %v102
    %132 = vmatpush.msra.mxu0 %v101
    %133 = vmatmul.f32.gmra.mxu0 %v99
    %v134 = vpop.f32.mrf.mxu0
    %v135 = vadd.f32 0.0, %v134
    %136 = vdwg.mxu0
    %v137 = vadd.f32 %v100, %v135
    %138 = vst.msk [vmem:[#allocation2] sm:$0xff] %vm36, %v137
    // Predicated region
    $region26: #{tpu_custom_call.1} parent=1 // pred_check
      %p139 = pneg %p21
    $region27: #{tpu_custom_call.1} parent=1 // pred_check_branch
      %141 = sbr.rel (%p139) target = $region29
    $region28: #{tpu_custom_call.1} parent=1 // pred_region
      %v142 = vld [vmem:[#allocation2] sm:$0xff]
      %v143 = vld [vmem:[%s4] sm:$0x1]
      %v145 = vperm.slane %v143, 0
      %v147 = vadd.f32 %v142, %v145
      %148 = vst.msk [vmem:[#allocation3] sm:$0xff] %vm36, %v147
    $region29: #{tpu_custom_call.1} parent=1 // pred_fallthru
      _
    // Predicated region
    $region30: #{tpu_custom_call.1} parent=1 // pred_check
      _
    $region31: #{tpu_custom_call.1} parent=1 // pred_check_branch
      %150 = sbr.rel (0) target = $region33
    $region32: #{tpu_custom_call.1} parent=1 // pred_region
      %152 = vsyncadd [#allocation4], 0
      %s154 = sshll.u32 [#allocation3], 4
      %s155 = int_to_ptr.vmem [resolvable:$true] %s154
      %s156 = sshll.u32 %s5, 4
      %s157 = int_to_ptr.hbm [resolvable:$true] %s156
      %159 = dma.vmem_to_hbm [thread:$0]  %s155, 128, %s157, [#allocation4]
    $region33: #{tpu_custom_call.1} parent=1 // pred_fallthru
      _
    // Predicated region
    $region34: #{tpu_custom_call.1} parent=1 // pred_check
      _
    $region35: #{tpu_custom_call.1} parent=1 // pred_check_branch
      %161 = sbr.rel (0) target = $region37
    $region36: #{tpu_custom_call.1} parent=1 // pred_region
      %163 = dma.done [#allocation4], 128
    $region37: #{tpu_custom_call.1} parent=1 // pred_fallthru
      _
    %164 = vsyncpa [#allocation4], 1

</llo_original>
